<compile_context>
chip_gen: v7x
topology: tpu7x:2x2x1
jax: 0.10.0
libtpu: 0.0.40
codegen_flags: <defaults>
</compile_context>

<pallas_src>
import jax
import jax.numpy as jnp
from jax import lax
from jax.experimental import pallas as pl
from jax.experimental.pallas import tpu as pltpu


def _center_loss_kernel(labels_ref,   # VMEM (1, TB)  int32 labels tile
                        xt_ref,       # VMEM (D, TB)  features^T tile (batch on lanes)
                        ct_ref,       # VMEM (D, C)   centers^T, resident across grid
                        o_ref):       # VMEM (1, TB)  lane-dense per-sample loss
    d, tb = xt_ref.shape
    num_classes = ct_ref.shape[1]

    # Vectorized gather of centers[labels[i]] via a one-hot MXU matmul.
    labels = labels_ref[...]                                        # (1, TB) i32
    class_ids = lax.broadcasted_iota(jnp.int32, (num_classes, tb), 0)
    onehot = (class_ids == labels).astype(jnp.float32)              # (C, TB)

    ct = ct_ref[...].astype(jnp.float32)                            # (D, C)
    cg = jnp.dot(ct, onehot, preferred_element_type=jnp.float32)    # (D, TB)

    x = xt_ref[...].astype(jnp.float32)                             # (D, TB)
    diff = x - cg
    dist = jnp.sum(diff * diff, axis=0, keepdims=True)              # (1, TB)

    # torch.clamp(min=1e-12, max=1e12) on the selected class distance; the
    # (C-1) masked-off zeros each clamp to 1e-12 and enter the class mean
    # analytically, keeping the per-sample mean-over-classes semantics.
    prob = jnp.clip(dist, 1e-12, 1e12)
    loss = (prob + (num_classes - 1) * 1e-12) / num_classes
    o_ref[...] = loss.astype(o_ref.dtype)


def _vmem_limit_bytes():
    # Per-generation VMEM cap with headroom below physical capacity:
    #   v7x (64 MiB VMEM)  -> 48 MiB;  v5e/v6e (128 MiB VMEM) -> 100 MiB.
    try:
        cap = getattr(pltpu.get_tpu_info(), "vmem_capacity_bytes", None)
    except Exception:
        cap = None
    if not cap:
        return 48 * 1024 * 1024  # v7x-safe fallback
    return int(min(cap - 16 * 1024 * 1024, 100 * 1024 * 1024))


def _pick_tile_b(tile_b, batch, feat_dim, num_classes, x_itemsize, c_itemsize,
                 vmem_limit):
    """Largest lane-multiple batch tile that fits the batch and VMEM budget."""
    b_pad_min = pl.cdiv(batch, 128) * 128
    tb = max(128, min((tile_b // 128) * 128, b_pad_min))

    def vmem_estimate(t):
        x_in = 2 * t * feat_dim * x_itemsize            # x^T tile, double-buffered
        cen = 2 * num_classes * feat_dim * c_itemsize   # resident centers^T
        lab = 2 * t * 4                                 # labels tile
        out = 2 * t * 4                                 # loss tile
        tmp = (num_classes + 3 * feat_dim) * t * 4      # onehot / cg / diff temps
        return x_in + cen + lab + out + tmp

    while tb > 128 and vmem_estimate(tb) > 0.7 * vmem_limit:
        tb -= 128
    return tb


def center_loss(x, centers, labels, *, tile_b=512):
    """x: (B, D), centers: (C, D), labels: (B,) int -> (B,) f32 per-sample loss."""
    B, D = x.shape
    C, D2 = centers.shape
    assert D == D2

    vmem_limit = _vmem_limit_bytes()
    TB = _pick_tile_b(tile_b, B, D, C, x.dtype.itemsize, centers.dtype.itemsize,
                      vmem_limit)
    n_tiles = pl.cdiv(B, TB)
    B_pad = n_tiles * TB

    labels = labels.astype(jnp.int32)
    if B_pad != B:
        x = jnp.pad(x, ((0, B_pad - B), (0, 0)))
        labels = jnp.pad(labels, (0, B_pad - B))

    # Batch on the 128-wide lane axis (feat_dim is small; module default is 2).
    xt = x.T                            # (D, B_pad)
    ct = centers.T                      # (D, C)
    labels2d = labels.reshape(1, B_pad)

    flops = B_pad * (2 * C * D + 4 * D + 4)
    bytes_accessed = (x.size * x.dtype.itemsize
                      + centers.size * centers.dtype.itemsize
                      + B_pad * 4      # labels
                      + B_pad * 4)     # loss output

    out = pl.pallas_call(
        _center_loss_kernel,
        out_shape=jax.ShapeDtypeStruct((1, B_pad), jnp.float32),
        grid_spec=pltpu.PrefetchScalarGridSpec(
            num_scalar_prefetch=0,
            grid=(n_tiles,),
            in_specs=[
                pl.BlockSpec((1, TB), lambda i: (0, i)),   # labels tile
                pl.BlockSpec((D, TB), lambda i: (0, i)),   # x^T tile (pipelined)
                # Centers stay VMEM-resident (constant index_map).  For very
                # large C*D this should be single-buffered or DMA-gathered from
                # pl.ANY HBM per tile; at CenterLoss sizes it is tiny.
                pl.BlockSpec((D, C), lambda i: (0, 0)),
            ],
            out_specs=pl.BlockSpec((1, TB), lambda i: (0, i)),
        ),
        compiler_params=pltpu.CompilerParams(
            dimension_semantics=("parallel",),   # shards tiles across v7x's 2 TCs
            vmem_limit_bytes=vmem_limit,
        ),
        cost_estimate=pl.CostEstimate(
            flops=flops, transcendentals=0, bytes_accessed=bytes_accessed),
    )(labels2d, xt, ct)

    return out[0, :B]


if __name__ == "__main__":
    # Module defaults: num_classes=10, feat_dim=2.  Small batch of 8.
    num_classes = 10
    feat_dim = 2
    batch = 8

    key = jax.random.PRNGKey(0)
    k_centers, k_x, k_labels = jax.random.split(key, 3)

    centers = jax.random.normal(k_centers, (num_classes, feat_dim), dtype=jnp.float32)
    x = jax.random.normal(k_x, (batch, feat_dim), dtype=jnp.float32)
    labels = jax.random.randint(k_labels, (batch,), 0, num_classes, dtype=jnp.int32)

    loss = jax.block_until_ready(center_loss(x, centers, labels))

    # Plain-JAX reference with exact PyTorch semantics (full distmat, one-hot
    # mask, clamp applied to every entry incl. masked zeros, mean over classes).
    distmat = (jnp.sum(x ** 2, axis=1, keepdims=True)
               + jnp.sum(centers ** 2, axis=1)[None, :]
               - 2.0 * x @ centers.T)
    mask = (labels[:, None] == jnp.arange(num_classes)[None, :]).astype(jnp.float32)
    ref = jnp.mean(jnp.clip(distmat * mask, 1e-12, 1e12), axis=1)

    assert loss.shape == (batch,)
    assert jnp.allclose(loss, ref, rtol=1e-5, atol=1e-5), (loss, ref)
    print("KERNEL_OK")
</pallas_src>

<mosaic_0001>
module attributes {stable_mosaic.version = 11 : i64} {
  func.func @_center_loss_kernel(%arg0: i32, %arg1: memref<1x128xi32, #tpu.memory_space<vmem>>, %arg2: memref<2x128xf32, #tpu.memory_space<vmem>>, %arg3: memref<2x10xf32, #tpu.memory_space<vmem>>, %arg4: memref<1x128xf32, #tpu.memory_space<vmem>>) attributes {dimension_semantics = [#tpu.dimension_semantics<parallel>], iteration_bounds = array<i64: 1>, scalar_prefetch = 0 : i64, scratch_operands = 0 : i64, tpu.core_type = #tpu.core_type<tc>, window_params = [{transform_indices = @transform_0, window_bounds = array<i64: 1, 128>}, {transform_indices = @transform_1, window_bounds = array<i64: 2, 128>}, {pipeline_mode = #tpu.pipeline_mode<synchronous>, transform_indices = @transform_2, window_bounds = array<i64: 2, 10>}, {transform_indices = @transform_3, window_bounds = array<i64: 1, 128>}]} {
    %c0 = arith.constant 0 : index
    %c0_0 = arith.constant 0 : index
    %0 = vector.load %arg1[%c0, %c0_0] : memref<1x128xi32, #tpu.memory_space<vmem>>, vector<1x128xi32>
    %1 = tpu.iota {dimensions = array<i32: 0>} : vector<10x128xi32>
    %2 = vector.broadcast %0 : vector<1x128xi32> to vector<10x128xi32>
    %3 = arith.cmpi eq, %1, %2 : vector<10x128xi32>
    %4 = arith.extui %3 : vector<10x128xi1> to vector<10x128xi32>
    %5 = arith.sitofp %4 : vector<10x128xi32> to vector<10x128xf32>
    %c0_1 = arith.constant 0 : index
    %c0_2 = arith.constant 0 : index
    %6 = vector.load %arg3[%c0_1, %c0_2] : memref<2x10xf32, #tpu.memory_space<vmem>>, vector<2x10xf32>
    %cst = arith.constant dense<0.000000e+00> : vector<2x128xf32>
    %7 = tpu.matmul %6, %5, %cst {dimension_numbers = #tpu.dot_dimension_numbers<[1], [0], [0], [1], [0, 0, 1, 1], [], []>} : vector<2x10xf32>, vector<10x128xf32>, vector<2x128xf32> -> vector<2x128xf32>
    %c0_3 = arith.constant 0 : index
    %c0_4 = arith.constant 0 : index
    %8 = vector.load %arg2[%c0_3, %c0_4] : memref<2x128xf32, #tpu.memory_space<vmem>>, vector<2x128xf32>
    %9 = arith.subf %8, %7 : vector<2x128xf32>
    %10 = arith.mulf %9, %9 : vector<2x128xf32>
    %cst_5 = arith.constant dense<0.000000e+00> : vector<128xf32>
    %11 = vector.multi_reduction <add>, %10, %cst_5 [0] : vector<2x128xf32> to vector<128xf32>
    %12 = vector.shape_cast %11 : vector<128xf32> to vector<1x128xf32>
    %cst_6 = arith.constant 9.99999996E-13 : f32
    %cst_7 = arith.constant 9.99999995E+11 : f32
    %13 = vector.broadcast %cst_6 : f32 to vector<1x128xf32>
    %14 = arith.maximumf %13, %12 : vector<1x128xf32>
    %15 = vector.broadcast %cst_7 : f32 to vector<1x128xf32>
    %16 = arith.minimumf %15, %14 : vector<1x128xf32>
    %cst_8 = arith.constant 9.000000e-12 : f32
    %17 = vector.broadcast %cst_8 : f32 to vector<1x128xf32>
    %18 = arith.addf %16, %17 : vector<1x128xf32>
    %cst_9 = arith.constant 1.000000e+01 : f32
    %19 = vector.broadcast %cst_9 : f32 to vector<1x128xf32>
    %20 = arith.divf %18, %19 : vector<1x128xf32>
    %c0_10 = arith.constant 0 : index
    %c0_11 = arith.constant 0 : index
    %21 = vector.load %arg4[%c0_10, %c0_11] : memref<1x128xf32, #tpu.memory_space<vmem>>, vector<1x128xf32>
    tpu.vector_store %arg4[%c0_10, %c0_11], %20 {strides = array<i32>} : memref<1x128xf32, #tpu.memory_space<vmem>>, vector<1x128xf32>,
    return
  }
  func.func @transform_0(%arg0: i32) -> (i32, i32) {
    %c0_i32 = arith.constant 0 : i32
    %c0_i32_0 = arith.constant 0 : i32
    return %c0_i32, %arg0 : i32, i32
  }
  func.func @transform_1(%arg0: i32) -> (i32, i32) {
    %c0_i32 = arith.constant 0 : i32
    %c0_i32_0 = arith.constant 0 : i32
    return %c0_i32, %arg0 : i32, i32
  }
  func.func @transform_2(%arg0: i32) -> (i32, i32) {
    %c0_i32 = arith.constant 0 : i32
    %c0_i32_0 = arith.constant 0 : i32
    %c0_i32_1 = arith.constant 0 : i32
    return %c0_i32, %c0_i32_0 : i32, i32
  }
  func.func @transform_3(%arg0: i32) -> (i32, i32) {
    %c0_i32 = arith.constant 0 : i32
    %c0_i32_0 = arith.constant 0 : i32
    return %c0_i32, %arg0 : i32, i32
  }
}

</mosaic_0001>

<llo_original>
// kernel: tpu_custom_call.1
$region0: #{tpu_custom_call.1}
  #allocation0 [shape = 'u32[]', space=smem, size = 0x4, offset = 0x4, fixed_abs, tag = 'smem constant byte address 0x4 - core index']
  #allocation1 [shape = 'u32[144,128]{1,0:T(1,128)}', space=vmem, size = 0x12000, scoped, tag = 'internal scratch']
  %s0 = inlined_call_operand.hbm [shape: s32[1,128], index: 0, kind: input, shape index: {}]
  %s1 = inlined_call_operand.vmem [shape: f32[2,128], index: 1, kind: input, shape index: {}]
  %s2 = inlined_call_operand.vmem [shape: f32[2,10], index: 2, kind: input, shape index: {}]
  %s3 = inlined_call_operand.hbm [shape: f32[1,128], index: 3, kind: output, shape index: {}]
  %s4 = sld [smem:[#allocation0]]
  $region26: #{tpu_custom_call.1} parent=0
    _
  %s6 = ssub.s32 1, %s4
  %s7 = scalar_select 0, %s6, %s4
  $region1: #{tpu_custom_call.1} parent=0
    #allocation2 [shape = 'u8[512]{0}', space=vmem, size = 0x400, scoped, tag = 'input window, operand 0, single buffered']
    #allocation3 [shape = 's32[1]{0}', space=sflag, size = 0x4, scoped, tag = 'scoped memory for tpu_custom_call.1']
    #allocation4 [shape = 's32[1]{0}', space=sflag, size = 0x4, scoped, tag = 'scoped memory for tpu_custom_call.1']
    #allocation5 [shape = 'u8[512]{0}', space=vmem, size = 0x400, scoped, tag = 'output window, operand 0, single buffered']
    %8 = vsyncpa [#allocation3], 0
    %9 = vsyncpa [#allocation4], 0
    // Predicated region
    $region2: #{tpu_custom_call.1} parent=1 // pred_check
      _
    $region3: #{tpu_custom_call.1} parent=1 // pred_check_branch
      %11 = sbr.rel (0) target = $region5
    $region4: #{tpu_custom_call.1} parent=1 // pred_region
      %s13 = ssub.s32 16, 16
      %14 = vsyncadd [#allocation3], %s13
      %s16 = sshll.u32 [#allocation2], 4
      %s17 = int_to_ptr.vmem [resolvable:$true] %s16
      %19 = dma.hbm_to_vmem [thread:$0]  %s0, 16, %s17, [#allocation3]
    $region5: #{tpu_custom_call.1} parent=1 // pred_fallthru
      _
    // Predicated region
    $region6: #{tpu_custom_call.1} parent=1 // pred_check
      _
    $region7: #{tpu_custom_call.1} parent=1 // pred_check_branch
      %21 = sbr.rel (0) target = $region9
    $region8: #{tpu_custom_call.1} parent=1 // pred_region
      _
    $region9: #{tpu_custom_call.1} parent=1 // pred_fallthru
      _
    // Predicated region
    $region10: #{tpu_custom_call.1} parent=1 // pred_check
      _
    $region11: #{tpu_custom_call.1} parent=1 // pred_check_branch
      %23 = sbr.rel (0) target = $region13
    $region12: #{tpu_custom_call.1} parent=1 // pred_region
      _
    $region13: #{tpu_custom_call.1} parent=1 // pred_fallthru
      _
    // Predicated region
    $region14: #{tpu_custom_call.1} parent=1 // pred_check
      _
    $region15: #{tpu_custom_call.1} parent=1 // pred_check_branch
      %25 = sbr.rel (0) target = $region17
    $region16: #{tpu_custom_call.1} parent=1 // pred_region
      %26 = dma.done [#allocation3], 16
    $region17: #{tpu_custom_call.1} parent=1 // pred_fallthru
      _
    %v27 = vld [vmem:[#allocation2] sm:$0x1]
    %v28 = vlaneseq
    %v29 = vshrl.u32 %v28, 7
    %v30 = vadd.s32 %v29, 8
    %v31 = vlaneseq
    %v32 = vshrl.u32 %v31, 7
    %v33 = vsub.s32 0, %v32
    %v34 = vrot.slane %v27, %v33
    %vm35 = vcmp.eq.s32.totalorder %v29, %v34
    %vm36 = vcmp.eq.s32.totalorder %v30, %v34
    %v37 = vsel %vm35, 1, 0
    %v38 = vsel %vm36, 1, 0
    %v39 = vcvt.s32.f32 %v37
    %v40 = vcvt.s32.f32 %v38
    %v41 = vld [vmem:[%s2] sm:$0x3]
    %vm42 = vcmask 80896
    %v44 = vsel %vm42, %v41, 0
    %vm46 = vcmask 1041408
    %v48 = vsel %vm46, %v40, 0
    %50 = vmatprep.subr.mxu0 0.0
    %51 = vmatpush1.msra.mxu0 %v39
    %52 = vmatprep.subr.mxu0 0.0
    %53 = vmatpush1.msra.mxu0 %v48
    %54 = vmatprep.subr.mxu0 0.0
    %55 = vmatpush1.msra.mxu0 0.0
    %56 = vmatprep.subr.mxu0 0.0
    %57 = vmatpush1.msra.mxu0 0.0
    %58 = vmatprep.subr.mxu0 0.0
    %59 = vmatpush1.msra.mxu0 0.0
    %60 = vmatprep.subr.mxu0 0.0
    %61 = vmatpush1.msra.mxu0 0.0
    %62 = vmatprep.subr.mxu0 0.0
    %63 = vmatpush1.msra.mxu0 0.0
    %64 = vmatprep.subr.mxu0 0.0
    %65 = vmatpush1.msra.mxu0 0.0
    %66 = vmatprep.subr.mxu0 0.0
    %67 = vmatpush1.msra.mxu0 0.0
    %68 = vmatprep.subr.mxu0 0.0
    %69 = vmatpush1.msra.mxu0 0.0
    %70 = vmatprep.subr.mxu0 0.0
    %71 = vmatpush1.msra.mxu0 0.0
    %72 = vmatprep.subr.mxu0 0.0
    %73 = vmatpush1.msra.mxu0 0.0
    %74 = vmatprep.subr.mxu0 0.0
    %75 = vmatpush1.msra.mxu0 0.0
    %76 = vmatprep.subr.mxu0 0.0
    %77 = vmatpush1.msra.mxu0 0.0
    %78 = vmatprep.subr.mxu0 0.0
    %79 = vmatpush1.msra.mxu0 0.0
    %80 = vmatprep.subr.mxu0 0.0
    %81 = vmatpush1.msra.mxu0 0.0
    %82 = vmatprep.subr.mxu0 0.0
    %83 = vmatpush1.msra.mxu0 0.0
    %84 = vmatprep.subr.mxu0 0.0
    %85 = vmatpush1.msra.mxu0 0.0
    %86 = vmatprep.subr.mxu0 0.0
    %87 = vmatpush1.msra.mxu0 0.0
    %88 = vmatprep.subr.mxu0 0.0
    %89 = vmatpush1.msra.mxu0 0.0
    %90 = vmatprep.subr.mxu0 0.0
    %91 = vmatpush1.msra.mxu0 0.0
    %92 = vmatprep.subr.mxu0 0.0
    %93 = vmatpush1.msra.mxu0 0.0
    %94 = vmatprep.subr.mxu0 0.0
    %95 = vmatpush1.msra.mxu0 0.0
    %96 = vmatprep.subr.mxu0 0.0
    %97 = vmatpush1.msra.mxu0 0.0
    %98 = vmatprep.subr.mxu0 0.0
    %99 = vmatpush1.msra.mxu0 0.0
    %100 = vmatprep.subr.mxu0 0.0
    %101 = vmatpush1.msra.mxu0 0.0
    %102 = vmatprep.subr.mxu0 0.0
    %103 = vmatpush1.msra.mxu0 0.0
    %104 = vmatprep.subr.mxu0 0.0
    %105 = vmatpush1.msra.mxu0 0.0
    %106 = vmatprep.subr.mxu0 0.0
    %107 = vmatpush1.msra.mxu0 0.0
    %108 = vmatprep.subr.mxu0 0.0
    %109 = vmatpush1.msra.mxu0 0.0
    %110 = vmatprep.subr.mxu0 0.0
    %111 = vmatpush1.msra.mxu0 0.0
    %112 = vmatprep.subr.mxu0 0.0
    %113 = vmatpush1.msra.mxu0 0.0
    %114 = vmatprep.mubr.f32.mxu0 0.0
    %115 = vmatmul.mubr.f32.gmra.mrb[0].mxu0 %v44
    %v116 = vpop.f32.mrb[0].mxu0
    %v117 = vadd.f32 0.0, %v116
    %v118 = vpop.f32.mrb[0].mxu0
    %119 = vdwg.mxu0
    %v120 = vld [vmem:[%s1] sm:$0x3]
    %v121 = vsub.f32 %v120, %v117
    %v122 = vmul.f32 %v121, %v121
    %v123 = vsel %vm46, %v122, 0.0
    %v124 = vrot.slane %v123, 4
    %v125 = vadd.f32 %v123, %v124
    %v126 = vrot.slane %v125, 2
    %v127 = vadd.f32 %v125, %v126
    %v128 = vrot.slane %v127, 1
    %v129 = vadd.f32 %v127, %v128
    %v130 = vmax.f32 %v129, 1e-12
    %v131 = vmin.f32 %v130, 1e+12
    %v132 = vadd.f32 %v131, 9e-12
    %v133 = vrcp.pop 10.0
    %v134 = vmul.f32 %v132, %v133
    %135 = vst [vmem:[#allocation5] sm:$0x1] %v134
    // Predicated region
    $region18: #{tpu_custom_call.1} parent=1 // pred_check
      _
    $region19: #{tpu_custom_call.1} parent=1 // pred_check_branch
      %137 = sbr.rel (0) target = $region21
    $region20: #{tpu_custom_call.1} parent=1 // pred_region
      %s139 = ssub.s32 16, 16
      %140 = vsyncadd [#allocation4], %s139
      %s142 = sshll.u32 [#allocation5], 4
      %s143 = int_to_ptr.vmem [resolvable:$true] %s142
      %145 = dma.vmem_to_hbm [thread:$0]  %s143, 16, %s3, [#allocation4]
    $region21: #{tpu_custom_call.1} parent=1 // pred_fallthru
      _
    // Predicated region
    $region22: #{tpu_custom_call.1} parent=1 // pred_check
      _
    $region23: #{tpu_custom_call.1} parent=1 // pred_check_branch
      %147 = sbr.rel (0) target = $region25
    $region24: #{tpu_custom_call.1} parent=1 // pred_region
      %148 = dma.done [#allocation4], 16
    $region25: #{tpu_custom_call.1} parent=1 // pred_fallthru
      _
    %149 = vsyncpa [#allocation3], 1
    %150 = vsyncpa [#allocation4], 1

</llo_original>
